<compile_context>
chip_gen: v7x
topology: tpu7x:2x2x1
jax: 0.10.0
libtpu: 0.0.40
codegen_flags: <defaults>
</compile_context>

<pallas_src>
import math
from functools import partial

import numpy as np
import jax
import jax.numpy as jnp
from jax.experimental import pallas as pl
from jax.experimental.pallas import tpu as pltpu


# -----------------------------------------------------------------------------
# Filter-bank generation (host-side parameter setup, mirrors rot_img()).
# F.affine_grid + F.grid_sample(bilinear, padding='zeros', align_corners=False).
# -----------------------------------------------------------------------------
def rot_img_np(x, theta, align_corners=False):
    x = np.asarray(x, dtype=np.float64)
    N, C, H, W = x.shape
    cos, sin = np.cos(theta), np.sin(theta)
    if align_corners:
        ys = np.linspace(-1.0, 1.0, H)
        xs = np.linspace(-1.0, 1.0, W)
    else:
        ys = (2.0 * np.arange(H) + 1.0) / H - 1.0
        xs = (2.0 * np.arange(W) + 1.0) / W - 1.0
    gy, gx = np.meshgrid(ys, xs, indexing="ij")
    # rot_mat = [[cos, -sin, 0], [sin, cos, 0]] applied to [x, y, 1]
    sx = cos * gx - sin * gy
    sy = sin * gx + cos * gy
    if align_corners:
        ix = (sx + 1.0) * 0.5 * (W - 1)
        iy = (sy + 1.0) * 0.5 * (H - 1)
    else:
        ix = ((sx + 1.0) * W - 1.0) * 0.5
        iy = ((sy + 1.0) * H - 1.0) * 0.5

    ix0 = np.floor(ix).astype(np.int64)
    iy0 = np.floor(iy).astype(np.int64)
    ix1, iy1 = ix0 + 1, iy0 + 1
    wx1 = ix - ix0
    wx0 = 1.0 - wx1
    wy1 = iy - iy0
    wy0 = 1.0 - wy1

    def gather(iy_, ix_):
        valid = ((iy_ >= 0) & (iy_ < H) & (ix_ >= 0) & (ix_ < W)).astype(np.float64)
        iyc = np.clip(iy_, 0, H - 1)
        ixc = np.clip(ix_, 0, W - 1)
        return x[:, :, iyc, ixc] * valid[None, None]          # 'zeros' padding mode

    out = (gather(iy0, ix0) * (wy0 * wx0)[None, None]
           + gather(iy0, ix1) * (wy0 * wx1)[None, None]
           + gather(iy1, ix0) * (wy1 * wx0)[None, None]
           + gather(iy1, ix1) * (wy1 * wx1)[None, None])
    return out.astype(np.float32)


def generate_filter_bank(kernel, group_order):
    """kernel: (O, I, k, k) -> filter bank (O, G, I, k, k)."""
    bank = np.stack(
        [rot_img_np(kernel, -np.pi * 2.0 / group_order * i) for i in range(group_order)]
    )                                                         # (G, O, I, k, k)
    return np.transpose(bank, (1, 0, 2, 3, 4))                # (O, G, I, k, k)


# -----------------------------------------------------------------------------
# Pallas kernel: in-VMEM im2col staging + one (Cout x Kc) @ (Kc x TB*TN) MXU dot
# + fused LeakyReLU + lane-dense store.
# -----------------------------------------------------------------------------
def _lifting_conv_kernel(w_ref, xsh_ref, o_ref, col_ref, *,
                         k, cin, tb, wout, tn, num_row_tiles, activation):
    # w_ref:   (Cout, Kc)           bf16  Kc = k*k*Cin, K-order (kh, kw, ci); constant
    # xsh_ref: (TB, k, Cin, Lp)     bf16  width-shifted planes, flattened rows*Wout;
    #                                      constant across the row-tile grid axis
    # o_ref:   (TB, Cout, TN)       out   TN = TH*Wout (multiple of 128 or full HW)
    # col_ref: (Kc, TB*TN)          bf16  VMEM scratch: in-kernel im2col columns
    if num_row_tiles == 1:
        base0 = 0                                       # static -> static slices below
    else:
        # TN is a multiple of 128 whenever num_row_tiles > 1 (see _pick_row_tile),
        # so the dynamic part of every lane offset is 128-aligned.
        base0 = pl.multiple_of(pl.program_id(1) * tn, 128)

    # In-kernel im2col: row shifts (kh) are pure lane shifts of the flattened
    # plane; column shifts (kw) were pre-staged as separate planes in the glue.
    for b in range(tb):
        for kh in range(k):
            src = base0 + kh * wout
            for kw in range(k):
                t = kh * k + kw
                col_ref[t * cin:(t + 1) * cin, b * tn:(b + 1) * tn] = (
                    xsh_ref[b, kw, :, pl.ds(src, tn)])

    # Single MXU matmul over the full contraction (K = k*k*Cin), f32 accumulation.
    acc = jnp.dot(w_ref[...], col_ref[...], preferred_element_type=jnp.float32)
    if activation:
        acc = jnp.maximum(acc, 0.01 * acc)              # LeakyReLU(0.01): mul + max
    for b in range(tb):
        o_ref[b, :, :] = acc[:, b * tn:(b + 1) * tn].astype(o_ref.dtype)


def _pick_row_tile(hout, wout, lane_target=2048):
    """Output-row tile TH such that TN = TH*Wout is a multiple of 128 (lane-dense
    unmasked stores) and the per-step blocks stay small regardless of image size."""
    g = math.gcd(wout, 128)
    th_unit = 128 // g
    if th_unit > hout or th_unit * wout > 4096:
        # TODO(synk): pathological widths (th_unit*Wout > 4096) or tiny heights fall
        # back to one full-image row tile; huge images with such widths would need a
        # manual halo-DMA path instead.
        return hout
    th = th_unit * max(1, min(hout // th_unit, lane_target // (th_unit * wout)))
    return min(th, hout)


def _pick_batch_tile(batch, tn, lane_budget=4096):
    """Fold batch into the lane axis while the combined lane tile stays modest."""
    if tn % 128 != 0:
        return 1
    tb = 1
    for cand in range(1, batch + 1):
        if batch % cand == 0 and cand * tn <= lane_budget:
            tb = cand
    return tb


@partial(jax.jit, static_argnames=("activation", "out_dtype"))
def rui_lifting_conv_cn(x_nchw, filter_bank, activation=True, out_dtype=jnp.float32):
    """Forward pass. x_nchw: (B, Cin, H, W); filter_bank: (O, G, Cin, k, k)."""
    B, Cin, H, W = x_nchw.shape
    O, G, Cin_w, k, _ = filter_bank.shape
    assert Cin_w == Cin
    Cout = O * G
    pad = (k - 1) // 2
    Hout = H + 2 * pad - k + 1
    Wout = W + 2 * pad - k + 1
    HW = Hout * Wout
    Kc = k * k * Cin

    # ---- tiling ----------------------------------------------------------------
    TH = _pick_row_tile(Hout, Wout)                     # output rows per grid step
    TN = TH * Wout                                      # lane tile per image
    R = -(-Hout // TH)                                  # row tiles (last may be partial)
    TB = _pick_batch_tile(B, TN)                        # images folded per grid step
    extra_rows = R * TH - Hout                          # bottom zero rows so all in-kernel
    Hp_eff = R * TH + k - 1                             # lane reads stay in bounds
    Lp = Hp_eff * Wout

    compute_dtype = jnp.bfloat16                        # bf16 operands, f32 MXU accum
    out_isz = jnp.dtype(out_dtype).itemsize

    # ---- glue: weights (O,G,Cin,k,k) -> (Cout, Kc), K-order (kh, kw, ci) --------
    w2 = filter_bank.reshape(Cout, Cin, k, k)
    w2 = jnp.transpose(w2, (0, 2, 3, 1)).reshape(Cout, Kc).astype(compute_dtype)

    # ---- glue: padded input -> k width-shifted, lane-flattened planes -----------
    # xsh[b, kw, ci, h*Wout + w] = x_pad[b, ci, h, w + kw]   (only k*Cin*2 B/pixel;
    # the k^2-sized im2col now lives entirely in VMEM inside the kernel)
    xp = jnp.pad(x_nchw, ((0, 0), (0, 0), (pad, pad + extra_rows), (pad, pad)))
    xsh = jnp.stack([xp[:, :, :, kw:kw + Wout] for kw in range(k)], axis=1)
    xsh = xsh.reshape(B, k, Cin, Lp).astype(compute_dtype)

    # ---- per-step VMEM footprint -> vmem limit with headroom --------------------
    xsh_blk = TB * k * Cin * Lp * 2
    w_blk = Cout * Kc * 2
    out_blk = TB * Cout * TN * out_isz
    col_blk = Kc * TB * TN * 2
    vmem_need = 2 * (xsh_blk + w_blk + out_blk) + col_blk
    vmem_limit = int(min(max(int(vmem_need * 1.5) + (2 << 20), 8 * 1024 * 1024),
                         64 * 1024 * 1024))

    cost = pl.CostEstimate(
        flops=2 * B * Cout * Kc * HW,
        transcendentals=0,
        bytes_accessed=int(xsh.size * 2 + w2.size * 2 + B * Cout * HW * out_isz),
    )

    kernel = partial(_lifting_conv_kernel, k=k, cin=Cin, tb=TB, wout=Wout,
                     tn=TN, num_row_tiles=R, activation=activation)

    out = pl.pallas_call(
        kernel,
        out_shape=jax.ShapeDtypeStruct((B, Cout, HW), out_dtype),
        grid_spec=pltpu.PrefetchScalarGridSpec(
            num_scalar_prefetch=0,
            grid=(B // TB, R),
            in_specs=[
                # filter bank: constant index_map -> DMA'd once, re-used every step
                pl.BlockSpec((Cout, Kc), lambda bb, r: (0, 0)),
                # width-shifted planes: constant over row tiles -> DMA'd once per
                # batch tile; full (Cin, Lp) trailing extents keep the block legal
                pl.BlockSpec((TB, k, Cin, Lp), lambda bb, r: (bb, 0, 0, 0)),
            ],
            out_specs=pl.BlockSpec((TB, Cout, TN), lambda bb, r: (bb, 0, r)),
            scratch_shapes=[pltpu.VMEM((Kc, TB * TN), compute_dtype)],
        ),
        compiler_params=pltpu.CompilerParams(
            dimension_semantics=("parallel", "parallel"),
            vmem_limit_bytes=vmem_limit,
        ),
        cost_estimate=cost,
    )(w2, xsh)

    # (B, Cout, Hout*Wout) contiguous -> (B, O, G, Wout, Hout).  This reproduces
    # PyTorch's `.view(B, O, G, W, H)` as the same raw reinterpretation of the
    # contiguous NCHW conv output (free reshape, no transpose, no slice).
    return out.reshape(B, O, G, Wout, Hout)


# -----------------------------------------------------------------------------
if __name__ == "__main__":
    B, Cin, H, W = 2, 4, 16, 16
    O, k, G = 4, 3, 4

    key = jax.random.PRNGKey(0)
    kx, kp = jax.random.split(key)
    x = jax.random.normal(kx, (B, Cin, H, W), dtype=jnp.float32)

    # kaiming_uniform_(a=sqrt(5))  =>  bound = 1 / sqrt(fan_in),  fan_in = Cin*k*k
    fan_in = Cin * k * k
    bound = 1.0 / math.sqrt(fan_in)
    base_kernel = jax.random.uniform(kp, (O, Cin, k, k), minval=-bound, maxval=bound,
                                     dtype=jnp.float32)

    filter_bank = jnp.asarray(generate_filter_bank(np.asarray(base_kernel), G),
                              dtype=jnp.float32)               # (O, G, Cin, k, k)

    out = rui_lifting_conv_cn(x, filter_bank, activation=True)
    out = jax.block_until_ready(out)

    # Reference: XLA conv + leaky_relu on the same bf16-rounded operands (the kernel
    # uses bf16 operands with f32 accumulation), so tolerances stay tight.
    x_bf = x.astype(jnp.bfloat16).astype(jnp.float32)
    fb_bf = filter_bank.astype(jnp.bfloat16).astype(jnp.float32)
    pad = (k - 1) // 2
    w_oihw = fb_bf.reshape(O * G, Cin, k, k)
    ref = jax.lax.conv_general_dilated(
        x_bf, w_oihw, window_strides=(1, 1), padding=[(pad, pad), (pad, pad)],
        dimension_numbers=("NCHW", "OIHW", "NCHW"),
        precision=jax.lax.Precision.HIGHEST)
    ref = jnp.where(ref >= 0, ref, 0.01 * ref)
    ref = ref.reshape(B, O, G, W, H)

    assert out.shape == (B, O, G, W, H)
    np.testing.assert_allclose(np.asarray(out), np.asarray(ref), rtol=2e-3, atol=2e-3)
    print("KERNEL_OK")
</pallas_src>

<mosaic_0001>
module attributes {stable_mosaic.version = 11 : i64} {
  func.func @_lifting_conv_kernel(%arg0: i32, %arg1: i32, %arg2: memref<16x36xbf16, #tpu.memory_space<vmem>>, %arg3: memref<2x3x4x288xbf16, #tpu.memory_space<vmem>>, %arg4: memref<2x16x256xf32, #tpu.memory_space<vmem>>, %arg5: memref<36x512xbf16, #tpu.memory_space<vmem>>) attributes {dimension_semantics = [#tpu.dimension_semantics<parallel>, #tpu.dimension_semantics<parallel>], iteration_bounds = array<i64: 1, 1>, scalar_prefetch = 0 : i64, scratch_operands = 1 : i64, tpu.core_type = #tpu.core_type<tc>, window_params = [{pipeline_mode = #tpu.pipeline_mode<synchronous>, transform_indices = @transform_0, window_bounds = array<i64: 16, 36>}, {transform_indices = @transform_1, window_bounds = array<i64: 2, 3, 4, 288>}, {transform_indices = @transform_2, window_bounds = array<i64: 2, 16, 256>}]} {
    %c0 = arith.constant 0 : index
    %c0_0 = arith.constant 0 : index
    %c0_1 = arith.constant 0 : index
    %c0_2 = arith.constant 0 : index
    %0 = vector.load %arg3[%c0, %c0_0, %c0_1, %c0_2] : memref<2x3x4x288xbf16, #tpu.memory_space<vmem>>, vector<1x1x4x256xbf16>
    %1 = vector.shape_cast %0 : vector<1x1x4x256xbf16> to vector<4x256xbf16>
    %c0_3 = arith.constant 0 : index
    %c0_4 = arith.constant 0 : index
    %2 = vector.load %arg5[%c0_3, %c0_4] : memref<36x512xbf16, #tpu.memory_space<vmem>>, vector<4x256xbf16>
    tpu.vector_store %arg5[%c0_3, %c0_4], %1 {strides = array<i32>} : memref<36x512xbf16, #tpu.memory_space<vmem>>, vector<4x256xbf16>,
    %c0_5 = arith.constant 0 : index
    %c1 = arith.constant 1 : index
    %c0_6 = arith.constant 0 : index
    %c0_7 = arith.constant 0 : index
    %3 = vector.load %arg3[%c0_5, %c1, %c0_6, %c0_7] : memref<2x3x4x288xbf16, #tpu.memory_space<vmem>>, vector<1x1x4x256xbf16>
    %4 = vector.shape_cast %3 : vector<1x1x4x256xbf16> to vector<4x256xbf16>
    %c4 = arith.constant 4 : index
    %c0_8 = arith.constant 0 : index
    %5 = vector.load %arg5[%c4, %c0_8] : memref<36x512xbf16, #tpu.memory_space<vmem>>, vector<4x256xbf16>
    tpu.vector_store %arg5[%c4, %c0_8], %4 {strides = array<i32>} : memref<36x512xbf16, #tpu.memory_space<vmem>>, vector<4x256xbf16>,
    %c0_9 = arith.constant 0 : index
    %c2 = arith.constant 2 : index
    %c0_10 = arith.constant 0 : index
    %c0_11 = arith.constant 0 : index
    %6 = vector.load %arg3[%c0_9, %c2, %c0_10, %c0_11] : memref<2x3x4x288xbf16, #tpu.memory_space<vmem>>, vector<1x1x4x256xbf16>
    %7 = vector.shape_cast %6 : vector<1x1x4x256xbf16> to vector<4x256xbf16>
    %c8 = arith.constant 8 : index
    %c0_12 = arith.constant 0 : index
    %8 = vector.load %arg5[%c8, %c0_12] : memref<36x512xbf16, #tpu.memory_space<vmem>>, vector<4x256xbf16>
    tpu.vector_store %arg5[%c8, %c0_12], %7 {strides = array<i32>} : memref<36x512xbf16, #tpu.memory_space<vmem>>, vector<4x256xbf16>,
    %c0_13 = arith.constant 0 : index
    %c0_14 = arith.constant 0 : index
    %c0_15 = arith.constant 0 : index
    %c16 = arith.constant 16 : index
    %9 = vector.load %arg3[%c0_13, %c0_14, %c0_15, %c16] : memref<2x3x4x288xbf16, #tpu.memory_space<vmem>>, vector<1x1x4x256xbf16>
    %10 = vector.shape_cast %9 : vector<1x1x4x256xbf16> to vector<4x256xbf16>
    %c12 = arith.constant 12 : index
    %c0_16 = arith.constant 0 : index
    %11 = vector.load %arg5[%c12, %c0_16] : memref<36x512xbf16, #tpu.memory_space<vmem>>, vector<4x256xbf16>
    tpu.vector_store %arg5[%c12, %c0_16], %10 {strides = array<i32>} : memref<36x512xbf16, #tpu.memory_space<vmem>>, vector<4x256xbf16>,
    %c0_17 = arith.constant 0 : index
    %c1_18 = arith.constant 1 : index
    %c0_19 = arith.constant 0 : index
    %c16_20 = arith.constant 16 : index
    %12 = vector.load %arg3[%c0_17, %c1_18, %c0_19, %c16_20] : memref<2x3x4x288xbf16, #tpu.memory_space<vmem>>, vector<1x1x4x256xbf16>
    %13 = vector.shape_cast %12 : vector<1x1x4x256xbf16> to vector<4x256xbf16>
    %c16_21 = arith.constant 16 : index
    %c0_22 = arith.constant 0 : index
    %14 = vector.load %arg5[%c16_21, %c0_22] : memref<36x512xbf16, #tpu.memory_space<vmem>>, vector<4x256xbf16>
    tpu.vector_store %arg5[%c16_21, %c0_22], %13 {strides = array<i32>} : memref<36x512xbf16, #tpu.memory_space<vmem>>, vector<4x256xbf16>,
    %c0_23 = arith.constant 0 : index
    %c2_24 = arith.constant 2 : index
    %c0_25 = arith.constant 0 : index
    %c16_26 = arith.constant 16 : index
    %15 = vector.load %arg3[%c0_23, %c2_24, %c0_25, %c16_26] : memref<2x3x4x288xbf16, #tpu.memory_space<vmem>>, vector<1x1x4x256xbf16>
    %16 = vector.shape_cast %15 : vector<1x1x4x256xbf16> to vector<4x256xbf16>
    %c20 = arith.constant 20 : index
    %c0_27 = arith.constant 0 : index
    %17 = vector.load %arg5[%c20, %c0_27] : memref<36x512xbf16, #tpu.memory_space<vmem>>, vector<4x256xbf16>
    tpu.vector_store %arg5[%c20, %c0_27], %16 {strides = array<i32>} : memref<36x512xbf16, #tpu.memory_space<vmem>>, vector<4x256xbf16>,
    %c0_28 = arith.constant 0 : index
    %c0_29 = arith.constant 0 : index
    %c0_30 = arith.constant 0 : index
    %c32 = arith.constant 32 : index
    %18 = vector.load %arg3[%c0_28, %c0_29, %c0_30, %c32] : memref<2x3x4x288xbf16, #tpu.memory_space<vmem>>, vector<1x1x4x256xbf16>
    %19 = vector.shape_cast %18 : vector<1x1x4x256xbf16> to vector<4x256xbf16>
    %c24 = arith.constant 24 : index
    %c0_31 = arith.constant 0 : index
    %20 = vector.load %arg5[%c24, %c0_31] : memref<36x512xbf16, #tpu.memory_space<vmem>>, vector<4x256xbf16>
    tpu.vector_store %arg5[%c24, %c0_31], %19 {strides = array<i32>} : memref<36x512xbf16, #tpu.memory_space<vmem>>, vector<4x256xbf16>,
    %c0_32 = arith.constant 0 : index
    %c1_33 = arith.constant 1 : index
    %c0_34 = arith.constant 0 : index
    %c32_35 = arith.constant 32 : index
    %21 = vector.load %arg3[%c0_32, %c1_33, %c0_34, %c32_35] : memref<2x3x4x288xbf16, #tpu.memory_space<vmem>>, vector<1x1x4x256xbf16>
    %22 = vector.shape_cast %21 : vector<1x1x4x256xbf16> to vector<4x256xbf16>
    %c28 = arith.constant 28 : index
    %c0_36 = arith.constant 0 : index
    %23 = vector.load %arg5[%c28, %c0_36] : memref<36x512xbf16, #tpu.memory_space<vmem>>, vector<4x256xbf16>
    tpu.vector_store %arg5[%c28, %c0_36], %22 {strides = array<i32>} : memref<36x512xbf16, #tpu.memory_space<vmem>>, vector<4x256xbf16>,
    %c0_37 = arith.constant 0 : index
    %c2_38 = arith.constant 2 : index
    %c0_39 = arith.constant 0 : index
    %c32_40 = arith.constant 32 : index
    %24 = vector.load %arg3[%c0_37, %c2_38, %c0_39, %c32_40] : memref<2x3x4x288xbf16, #tpu.memory_space<vmem>>, vector<1x1x4x256xbf16>
    %25 = vector.shape_cast %24 : vector<1x1x4x256xbf16> to vector<4x256xbf16>
    %c32_41 = arith.constant 32 : index
    %c0_42 = arith.constant 0 : index
    %26 = vector.load %arg5[%c32_41, %c0_42] : memref<36x512xbf16, #tpu.memory_space<vmem>>, vector<4x256xbf16>
    tpu.vector_store %arg5[%c32_41, %c0_42], %25 {strides = array<i32>} : memref<36x512xbf16, #tpu.memory_space<vmem>>, vector<4x256xbf16>,
    %c1_43 = arith.constant 1 : index
    %c0_44 = arith.constant 0 : index
    %c0_45 = arith.constant 0 : index
    %c0_46 = arith.constant 0 : index
    %27 = vector.load %arg3[%c1_43, %c0_44, %c0_45, %c0_46] : memref<2x3x4x288xbf16, #tpu.memory_space<vmem>>, vector<1x1x4x256xbf16>
    %28 = vector.shape_cast %27 : vector<1x1x4x256xbf16> to vector<4x256xbf16>
    %c0_47 = arith.constant 0 : index
    %c256 = arith.constant 256 : index
    %29 = vector.load %arg5[%c0_47, %c256] : memref<36x512xbf16, #tpu.memory_space<vmem>>, vector<4x256xbf16>
    tpu.vector_store %arg5[%c0_47, %c256], %28 {strides = array<i32>} : memref<36x512xbf16, #tpu.memory_space<vmem>>, vector<4x256xbf16>,
    %c1_48 = arith.constant 1 : index
    %c1_49 = arith.constant 1 : index
    %c0_50 = arith.constant 0 : index
    %c0_51 = arith.constant 0 : index
    %30 = vector.load %arg3[%c1_48, %c1_49, %c0_50, %c0_51] : memref<2x3x4x288xbf16, #tpu.memory_space<vmem>>, vector<1x1x4x256xbf16>
    %31 = vector.shape_cast %30 : vector<1x1x4x256xbf16> to vector<4x256xbf16>
    %c4_52 = arith.constant 4 : index
    %c256_53 = arith.constant 256 : index
    %32 = vector.load %arg5[%c4_52, %c256_53] : memref<36x512xbf16, #tpu.memory_space<vmem>>, vector<4x256xbf16>
    tpu.vector_store %arg5[%c4_52, %c256_53], %31 {strides = array<i32>} : memref<36x512xbf16, #tpu.memory_space<vmem>>, vector<4x256xbf16>,
    %c1_54 = arith.constant 1 : index
    %c2_55 = arith.constant 2 : index
    %c0_56 = arith.constant 0 : index
    %c0_57 = arith.constant 0 : index
    %33 = vector.load %arg3[%c1_54, %c2_55, %c0_56, %c0_57] : memref<2x3x4x288xbf16, #tpu.memory_space<vmem>>, vector<1x1x4x256xbf16>
    %34 = vector.shape_cast %33 : vector<1x1x4x256xbf16> to vector<4x256xbf16>
    %c8_58 = arith.constant 8 : index
    %c256_59 = arith.constant 256 : index
    %35 = vector.load %arg5[%c8_58, %c256_59] : memref<36x512xbf16, #tpu.memory_space<vmem>>, vector<4x256xbf16>
    tpu.vector_store %arg5[%c8_58, %c256_59], %34 {strides = array<i32>} : memref<36x512xbf16, #tpu.memory_space<vmem>>, vector<4x256xbf16>,
    %c1_60 = arith.constant 1 : index
    %c0_61 = arith.constant 0 : index
    %c0_62 = arith.constant 0 : index
    %c16_63 = arith.constant 16 : index
    %36 = vector.load %arg3[%c1_60, %c0_61, %c0_62, %c16_63] : memref<2x3x4x288xbf16, #tpu.memory_space<vmem>>, vector<1x1x4x256xbf16>
    %37 = vector.shape_cast %36 : vector<1x1x4x256xbf16> to vector<4x256xbf16>
    %c12_64 = arith.constant 12 : index
    %c256_65 = arith.constant 256 : index
    %38 = vector.load %arg5[%c12_64, %c256_65] : memref<36x512xbf16, #tpu.memory_space<vmem>>, vector<4x256xbf16>
    tpu.vector_store %arg5[%c12_64, %c256_65], %37 {strides = array<i32>} : memref<36x512xbf16, #tpu.memory_space<vmem>>, vector<4x256xbf16>,
    %c1_66 = arith.constant 1 : index
    %c1_67 = arith.constant 1 : index
    %c0_68 = arith.constant 0 : index
    %c16_69 = arith.constant 16 : index
    %39 = vector.load %arg3[%c1_66, %c1_67, %c0_68, %c16_69] : memref<2x3x4x288xbf16, #tpu.memory_space<vmem>>, vector<1x1x4x256xbf16>
    %40 = vector.shape_cast %39 : vector<1x1x4x256xbf16> to vector<4x256xbf16>
    %c16_70 = arith.constant 16 : index
    %c256_71 = arith.constant 256 : index
    %41 = vector.load %arg5[%c16_70, %c256_71] : memref<36x512xbf16, #tpu.memory_space<vmem>>, vector<4x256xbf16>
    tpu.vector_store %arg5[%c16_70, %c256_71], %40 {strides = array<i32>} : memref<36x512xbf16, #tpu.memory_space<vmem>>, vector<4x256xbf16>,
    %c1_72 = arith.constant 1 : index
    %c2_73 = arith.constant 2 : index
    %c0_74 = arith.constant 0 : index
    %c16_75 = arith.constant 16 : index
    %42 = vector.load %arg3[%c1_72, %c2_73, %c0_74, %c16_75] : memref<2x3x4x288xbf16, #tpu.memory_space<vmem>>, vector<1x1x4x256xbf16>
    %43 = vector.shape_cast %42 : vector<1x1x4x256xbf16> to vector<4x256xbf16>
    %c20_76 = arith.constant 20 : index
    %c256_77 = arith.constant 256 : index
    %44 = vector.load %arg5[%c20_76, %c256_77] : memref<36x512xbf16, #tpu.memory_space<vmem>>, vector<4x256xbf16>
    tpu.vector_store %arg5[%c20_76, %c256_77], %43 {strides = array<i32>} : memref<36x512xbf16, #tpu.memory_space<vmem>>, vector<4x256xbf16>,
    %c1_78 = arith.constant 1 : index
    %c0_79 = arith.constant 0 : index
    %c0_80 = arith.constant 0 : index
    %c32_81 = arith.constant 32 : index
    %45 = vector.load %arg3[%c1_78, %c0_79, %c0_80, %c32_81] : memref<2x3x4x288xbf16, #tpu.memory_space<vmem>>, vector<1x1x4x256xbf16>
    %46 = vector.shape_cast %45 : vector<1x1x4x256xbf16> to vector<4x256xbf16>
    %c24_82 = arith.constant 24 : index
    %c256_83 = arith.constant 256 : index
    %47 = vector.load %arg5[%c24_82, %c256_83] : memref<36x512xbf16, #tpu.memory_space<vmem>>, vector<4x256xbf16>
    tpu.vector_store %arg5[%c24_82, %c256_83], %46 {strides = array<i32>} : memref<36x512xbf16, #tpu.memory_space<vmem>>, vector<4x256xbf16>,
    %c1_84 = arith.constant 1 : index
    %c1_85 = arith.constant 1 : index
    %c0_86 = arith.constant 0 : index
    %c32_87 = arith.constant 32 : index
    %48 = vector.load %arg3[%c1_84, %c1_85, %c0_86, %c32_87] : memref<2x3x4x288xbf16, #tpu.memory_space<vmem>>, vector<1x1x4x256xbf16>
    %49 = vector.shape_cast %48 : vector<1x1x4x256xbf16> to vector<4x256xbf16>
    %c28_88 = arith.constant 28 : index
    %c256_89 = arith.constant 256 : index
    %50 = vector.load %arg5[%c28_88, %c256_89] : memref<36x512xbf16, #tpu.memory_space<vmem>>, vector<4x256xbf16>
    tpu.vector_store %arg5[%c28_88, %c256_89], %49 {strides = array<i32>} : memref<36x512xbf16, #tpu.memory_space<vmem>>, vector<4x256xbf16>,
    %c1_90 = arith.constant 1 : index
    %c2_91 = arith.constant 2 : index
    %c0_92 = arith.constant 0 : index
    %c32_93 = arith.constant 32 : index
    %51 = vector.load %arg3[%c1_90, %c2_91, %c0_92, %c32_93] : memref<2x3x4x288xbf16, #tpu.memory_space<vmem>>, vector<1x1x4x256xbf16>
    %52 = vector.shape_cast %51 : vector<1x1x4x256xbf16> to vector<4x256xbf16>
    %c32_94 = arith.constant 32 : index
    %c256_95 = arith.constant 256 : index
    %53 = vector.load %arg5[%c32_94, %c256_95] : memref<36x512xbf16, #tpu.memory_space<vmem>>, vector<4x256xbf16>
    tpu.vector_store %arg5[%c32_94, %c256_95], %52 {strides = array<i32>} : memref<36x512xbf16, #tpu.memory_space<vmem>>, vector<4x256xbf16>,
    %c0_96 = arith.constant 0 : index
    %c0_97 = arith.constant 0 : index
    %54 = vector.load %arg2[%c0_96, %c0_97] : memref<16x36xbf16, #tpu.memory_space<vmem>>, vector<16x36xbf16>
    %c0_98 = arith.constant 0 : index
    %c0_99 = arith.constant 0 : index
    %55 = vector.load %arg5[%c0_98, %c0_99] : memref<36x512xbf16, #tpu.memory_space<vmem>>, vector<36x512xbf16>
    %cst = arith.constant dense<0.000000e+00> : vector<16x512xf32>
    %56 = tpu.matmul %54, %55, %cst {dimension_numbers = #tpu.dot_dimension_numbers<[1], [0], [0], [1], [0, 0, 1, 1], [], []>} : vector<16x36xbf16>, vector<36x512xbf16>, vector<16x512xf32> -> vector<16x512xf32>
    %cst_100 = arith.constant 0.00999999977 : f32
    %57 = vector.broadcast %cst_100 : f32 to vector<16x512xf32>
    %58 = arith.mulf %57, %56 : vector<16x512xf32>
    %59 = arith.maximumf %56, %58 : vector<16x512xf32>
    %60 = vector.extract_strided_slice %59 {offsets = [0, 0], sizes = [16, 256], strides = [1, 1]} : vector<16x512xf32> to vector<16x256xf32>
    %c0_101 = arith.constant 0 : index
    %c0_102 = arith.constant 0 : index
    %c0_103 = arith.constant 0 : index
    %61 = vector.load %arg4[%c0_101, %c0_102, %c0_103] : memref<2x16x256xf32, #tpu.memory_space<vmem>>, vector<1x16x256xf32>
    %62 = vector.shape_cast %61 : vector<1x16x256xf32> to vector<16x256xf32>
    %63 = vector.shape_cast %60 : vector<16x256xf32> to vector<1x16x256xf32>
    tpu.vector_store %arg4[%c0_101, %c0_102, %c0_103], %63 {strides = array<i32>} : memref<2x16x256xf32, #tpu.memory_space<vmem>>, vector<1x16x256xf32>,
    %64 = vector.extract_strided_slice %59 {offsets = [0, 256], sizes = [16, 256], strides = [1, 1]} : vector<16x512xf32> to vector<16x256xf32>
    %c1_104 = arith.constant 1 : index
    %c0_105 = arith.constant 0 : index
    %c0_106 = arith.constant 0 : index
    %65 = vector.load %arg4[%c1_104, %c0_105, %c0_106] : memref<2x16x256xf32, #tpu.memory_space<vmem>>, vector<1x16x256xf32>
    %66 = vector.shape_cast %65 : vector<1x16x256xf32> to vector<16x256xf32>
    %67 = vector.shape_cast %64 : vector<16x256xf32> to vector<1x16x256xf32>
    tpu.vector_store %arg4[%c1_104, %c0_105, %c0_106], %67 {strides = array<i32>} : memref<2x16x256xf32, #tpu.memory_space<vmem>>, vector<1x16x256xf32>,
    return
  }
  func.func @transform_0(%arg0: i32, %arg1: i32) -> (i32, i32) {
    %c0_i32 = arith.constant 0 : i32
    %c0_i32_0 = arith.constant 0 : i32
    %c0_i32_1 = arith.constant 0 : i32
    return %c0_i32, %c0_i32_0 : i32, i32
  }
  func.func @transform_1(%arg0: i32, %arg1: i32) -> (i32, i32, i32, i32) {
    %c0_i32 = arith.constant 0 : i32
    %c0_i32_0 = arith.constant 0 : i32
    %c0_i32_1 = arith.constant 0 : i32
    %c0_i32_2 = arith.constant 0 : i32
    return %arg0, %c0_i32, %c0_i32_0, %c0_i32_1 : i32, i32, i32, i32
  }
  func.func @transform_2(%arg0: i32, %arg1: i32) -> (i32, i32, i32) {
    %c0_i32 = arith.constant 0 : i32
    %c0_i32_0 = arith.constant 0 : i32
    return %arg0, %c0_i32, %arg1 : i32, i32, i32
  }
}

</mosaic_0001>

<llo_original>
// kernel: rui_lifting_conv_cn.1
$region0: #{rui_lifting_conv_cn.1}
  #allocation0 [shape = 'u32[]', space=smem, size = 0x4, offset = 0x4, fixed_abs, tag = 'smem constant byte address 0x4 - core index']
  #allocation1 [shape = 'u32[144,128]{1,0:T(1,128)}', space=vmem, size = 0x12000, scoped, tag = 'internal scratch']
  #allocation2 [shape = 'bf16[36,512]{1,0:T(8,128)(2,1)}', space=vmem, size = 0xa000, scoped, tag = 'scratch operand']
  %s0 = inlined_call_operand.vmem [shape: bf16[16,36], index: 0, kind: input, shape index: {}]
  %s1 = inlined_call_operand.vmem [shape: bf16[2,3,4,288], index: 1, kind: input, shape index: {}]
  %s2 = inlined_call_operand.vmem [shape: f32[2,16,256], index: 2, kind: output, shape index: {}]
  %s3 = sld [smem:[#allocation0]]
  $region18: #{rui_lifting_conv_cn.1} parent=0
    _
  %s5 = ssub.s32 1, %s3
  %s6 = scalar_select 0, %s5, %s3
  // Predicated region
  $region2: #{rui_lifting_conv_cn.1} parent=0 // pred_check
    _
  $region3: #{rui_lifting_conv_cn.1} parent=0 // pred_check_branch
    %8 = sbr.rel (0) target = $region5
  $region4: #{rui_lifting_conv_cn.1} parent=0 // pred_region
    _
  $region5: #{rui_lifting_conv_cn.1} parent=0 // pred_fallthru
    _
  // Predicated region
  $region6: #{rui_lifting_conv_cn.1} parent=0 // pred_check
    _
  $region7: #{rui_lifting_conv_cn.1} parent=0 // pred_check_branch
    %10 = sbr.rel (0) target = $region9
  $region8: #{rui_lifting_conv_cn.1} parent=0 // pred_region
    _
  $region9: #{rui_lifting_conv_cn.1} parent=0 // pred_fallthru
    _
  %v12 = vld [vmem:[%s1] sm:$0xf]
  %v15 = vunpack.c.l.s4 1983009808
  %v16 = vunpack.c.0.s8 %v15
  %v17 = vlaneseq
  %v18 = vshrl.u32 %v17, 7
  %v19 = vsub.s32 %v16, %v18
  %v20 = vrot.slane %v12, %v19
  %22 = vst [vmem:[#allocation2] sm:$0x33] %v20
  %s23 = scalar_lea.vmem %s1, 6
  %v24 = vld [vmem:[%s23] sm:$0xf]
  %v26 = vcombine.low %v24, %v24
  %v28 = vunpack.c.l.s4 1983009808
  %v29 = vunpack.c.0.s8 %v28
  %v30 = vlaneseq
  %v31 = vshrl.u32 %v30, 7
  %v32 = vsub.s32 %v29, %v31
  %v33 = vrot.slane %v26, %v32
  %35 = vst [vmem:[#allocation2] sm:$0xcc] %v33
  %s36 = scalar_lea.vmem %s1, 12
  %v37 = vld [vmem:[%s36] sm:$0xf]
  %v40 = vunpack.c.l.s4 1983009808
  %v41 = vunpack.c.0.s8 %v40
  %v42 = vlaneseq
  %v43 = vshrl.u32 %v42, 7
  %v44 = vsub.s32 %v41, %v43
  %v45 = vrot.slane %v37, %v44
  %47 = vst [vmem:[#allocation2 + $0x10] sm:$0x33] %v45
  %v48 = vld [vmem:[%s1] sm:$0x3f]
  %v50 = vcombine.low %v48, %v48
  %v52 = vunpack.c.l.s4 1983009808
  %v53 = vunpack.c.0.s8 %v52
  %v54 = vlaneseq
  %v55 = vshrl.u32 %v54, 7
  %v56 = vsub.s32 %v53, %v55
  %v57 = vrot.slane %v50, %v56
  %v59 = vunpack.c.l.s4 1983009808
  %v60 = vunpack.c.0.s8 %v59
  %v61 = vlaneseq
  %v62 = vshrl.u32 %v61, 7
  %v63 = vsub.s32 %v60, %v62
  %v64 = vrot.slane %v48, %v63
  %65 = vrot.lane.b32.xlu0 %v57, 112
  %v66 = vpop.permute.xlu0 %65
  %67 = vrot.lane.b32.xlu0 %v64, 112
  %v68 = vpop.permute.xlu0 %67
  %v69 = vrot.slane %v66, 4
  %v70 = vrot.slane %v68, 4
  %vm71 = vcmask 1043456
  %v72 = vsel %vm71, %v69, %v70
  %vm73 = vcmask 916480
  %v74 = vsel %vm73, %v66, %v72
  %76 = vst [vmem:[#allocation2 + $0x10] sm:$0xcc] %v74
  %v77 = vld [vmem:[%s23] sm:$0x3f]
  %v79 = vcombine.high %v77, %v77
  %v81 = vunpack.c.l.s4 1983009808
  %v82 = vunpack.c.0.s8 %v81
  %v83 = vlaneseq
  %v84 = vshrl.u32 %v83, 7
  %v85 = vsub.s32 %v82, %v84
  %v86 = vrot.slane %v77, %v85
  %v88 = vunpack.c.l.s4 1983009808
  %v89 = vunpack.c.0.s8 %v88
  %v90 = vlaneseq
  %v91 = vshrl.u32 %v90, 7
  %v92 = vsub.s32 %v89, %v91
  %v93 = vrot.slane %v79, %v92
  %94 = vrot.lane.b32.xlu0 %v86, 112
  %v95 = vpop.permute.xlu0 %94
  %96 = vrot.lane.b32.xlu0 %v93, 112
  %v97 = vpop.permute.xlu0 %96
  %v98 = vrot.slane %v95, 4
  %v99 = vrot.slane %v97, 4
  %v100 = vsel %vm71, %v98, %v99
  %v101 = vsel %vm73, %v95, %v100
  %103 = vst [vmem:[#allocation2 + $0x20] sm:$0x33] %v101
  %v104 = vld [vmem:[%s36] sm:$0x3f]
  %v106 = vcombine.low %v104, %v104
  %v108 = vunpack.c.l.s4 1983009808
  %v109 = vunpack.c.0.s8 %v108
  %v110 = vlaneseq
  %v111 = vshrl.u32 %v110, 7
  %v112 = vsub.s32 %v109, %v111
  %v113 = vrot.slane %v106, %v112
  %v115 = vunpack.c.l.s4 1983009808
  %v116 = vunpack.c.0.s8 %v115
  %v117 = vlaneseq
  %v118 = vshrl.u32 %v117, 7
  %v119 = vsub.s32 %v116, %v118
  %v120 = vrot.slane %v104, %v119
  %121 = vrot.lane.b32.xlu0 %v113, 112
  %v122 = vpop.permute.xlu0 %121
  %123 = vrot.lane.b32.xlu0 %v120, 112
  %v124 = vpop.permute.xlu0 %123
  %v125 = vrot.slane %v122, 4
  %v126 = vrot.slane %v124, 4
  %v127 = vsel %vm71, %v125, %v126
  %v128 = vsel %vm73, %v122, %v127
  %130 = vst [vmem:[#allocation2 + $0x20] sm:$0xcc] %v128
  %v131 = vld [vmem:[%s1] sm:$0x3f]
  %v133 = vcombine.high %v131, %v131
  %v135 = vunpack.c.l.s4 1983009808
  %v136 = vunpack.c.0.s8 %v135
  %v137 = vlaneseq
  %v138 = vshrl.u32 %v137, 7
  %v139 = vsub.s32 %v136, %v138
  %v140 = vrot.slane %v131, %v139
  %v142 = vunpack.c.l.s4 1983009808
  %v143 = vunpack.c.0.s8 %v142
  %v144 = vlaneseq
  %v145 = vshrl.u32 %v144, 7
  %v146 = vsub.s32 %v143, %v145
  %v147 = vrot.slane %v133, %v146
  %148 = vrot.lane.b32.xlu0 %v140, 96
  %v149 = vpop.permute.xlu0 %148
  %150 = vrot.lane.b32.xlu0 %v147, 96
  %v151 = vpop.permute.xlu0 %150
  %v152 = vrot.slane %v149, 4
  %v153 = vrot.slane %v151, 4
  %v154 = vsel %vm71, %v152, %v153
  %vm155 = vcmask 785408
  %v156 = vsel %vm155, %v149, %v154
  %158 = vst [vmem:[#allocation2 + $0x30] sm:$0x33] %v156
  %v159 = vld [vmem:[%s23] sm:$0x3f]
  %v161 = vcombine.low %v159, %v159
  %v163 = vunpack.c.l.s4 1983009808
  %v164 = vunpack.c.0.s8 %v163
  %v165 = vlaneseq
  %v166 = vshrl.u32 %v165, 7
  %v167 = vsub.s32 %v164, %v166
  %v168 = vrot.slane %v161, %v167
  %v170 = vunpack.c.l.s4 1983009808
  %v171 = vunpack.c.0.s8 %v170
  %v172 = vlaneseq
  %v173 = vshrl.u32 %v172, 7
  %v174 = vsub.s32 %v171, %v173
  %v175 = vrot.slane %v159, %v174
  %176 = vrot.lane.b32.xlu0 %v168, 96
  %v177 = vpop.permute.xlu0 %176
  %178 = vrot.lane.b32.xlu0 %v175, 96
  %v179 = vpop.permute.xlu0 %178
  %v180 = vrot.slane %v177, 4
  %v181 = vrot.slane %v179, 4
  %v182 = vsel %vm71, %v180, %v181
  %v183 = vsel %vm155, %v177, %v182
  %185 = vst [vmem:[#allocation2 + $0x30] sm:$0xcc] %v183
  %v186 = vld [vmem:[%s36] sm:$0x3f]
  %v188 = vcombine.high %v186, %v186
  %v190 = vunpack.c.l.s4 1983009808
  %v191 = vunpack.c.0.s8 %v190
  %v192 = vlaneseq
  %v193 = vshrl.u32 %v192, 7
  %v194 = vsub.s32 %v191, %v193
  %v195 = vrot.slane %v186, %v194
  %v197 = vunpack.c.l.s4 1983009808
  %v198 = vunpack.c.0.s8 %v197
  %v199 = vlaneseq
  %v200 = vshrl.u32 %v199, 7
  %v201 = vsub.s32 %v198, %v200
  %v202 = vrot.slane %v188, %v201
  %203 = vrot.lane.b32.xlu0 %v195, 96
  %v204 = vpop.permute.xlu0 %203
  %205 = vrot.lane.b32.xlu0 %v202, 96
  %v206 = vpop.permute.xlu0 %205
  %v207 = vrot.slane %v204, 4
  %v208 = vrot.slane %v206, 4
  %v209 = vsel %vm71, %v207, %v208
  %v210 = vsel %vm155, %v204, %v209
  %212 = vst [vmem:[#allocation2 + $0x40] sm:$0x33] %v210
  %s213 = scalar_lea.vmem %s1, 18
  %v214 = vld [vmem:[%s213] sm:$0xf]
  %v217 = vunpack.c.l.s4 1983009808
  %v218 = vunpack.c.0.s8 %v217
  %v219 = vlaneseq
  %v220 = vshrl.u32 %v219, 7
  %v221 = vsub.s32 %v218, %v220
  %v222 = vrot.slane %v214, %v221
  %224 = vst [vmem:[#allocation2 + $0x8] sm:$0x33] %v222
  %s225 = scalar_lea.vmem %s1, 24
  %v226 = vld [vmem:[%s225] sm:$0xf]
  %v228 = vcombine.low %v226, %v226
  %v230 = vunpack.c.l.s4 1983009808
  %v231 = vunpack.c.0.s8 %v230
  %v232 = vlaneseq
  %v233 = vshrl.u32 %v232, 7
  %v234 = vsub.s32 %v231, %v233
  %v235 = vrot.slane %v228, %v234
  %237 = vst [vmem:[#allocation2 + $0x8] sm:$0xcc] %v235
  %s238 = scalar_lea.vmem %s1, 30
  %v239 = vld [vmem:[%s238] sm:$0xf]
  %v242 = vunpack.c.l.s4 1983009808
  %v243 = vunpack.c.0.s8 %v242
  %v244 = vlaneseq
  %v245 = vshrl.u32 %v244, 7
  %v246 = vsub.s32 %v243, %v245
  %v247 = vrot.slane %v239, %v246
  %249 = vst [vmem:[#allocation2 + $0x18] sm:$0x33] %v247
  %v250 = vld [vmem:[%s213] sm:$0x3f]
  %v252 = vcombine.low %v250, %v250
  %v254 = vunpack.c.l.s4 1983009808
  %v255 = vunpack.c.0.s8 %v254
  %v256 = vlaneseq
  %v257 = vshrl.u32 %v256, 7
  %v258 = vsub.s32 %v255, %v257
  %v259 = vrot.slane %v252, %v258
  %v261 = vunpack.c.l.s4 1983009808
  %v262 = vunpack.c.0.s8 %v261
  %v263 = vlaneseq
  %v264 = vshrl.u32 %v263, 7
  %v265 = vsub.s32 %v262, %v264
  %v266 = vrot.slane %v250, %v265
  %267 = vrot.lane.b32.xlu0 %v259, 112
  %v268 = vpop.permute.xlu0 %267
  %269 = vrot.lane.b32.xlu0 %v266, 112
  %v270 = vpop.permute.xlu0 %269
  %v271 = vrot.slane %v268, 4
  %v272 = vrot.slane %v270, 4
  %v273 = vsel %vm71, %v271, %v272
  %v274 = vsel %vm73, %v268, %v273
  %276 = vst [vmem:[#allocation2 + $0x18] sm:$0xcc] %v274
  %v277 = vld [vmem:[%s225] sm:$0x3f]
  %v279 = vcombine.high %v277, %v277
  %v281 = vunpack.c.l.s4 1983009808
  %v282 = vunpack.c.0.s8 %v281
  %v283 = vlaneseq
  %v284 = vshrl.u32 %v283, 7
  %v285 = vsub.s32 %v282, %v284
  %v286 = vrot.slane %v277, %v285
  %v288 = vunpack.c.l.s4 1983009808
  %v289 = vunpack.c.0.s8 %v288
  %v290 = vlaneseq
  %v291 = vshrl.u32 %v290, 7
  %v292 = vsub.s32 %v289, %v291
  %v293 = vrot.slane %v279, %v292
  %294 = vrot.lane.b32.xlu0 %v286, 112
  %v295 = vpop.permute.xlu0 %294
  %296 = vrot.lane.b32.xlu0 %v293, 112
  %v297 = vpop.permute.xlu0 %296
  %v298 = vrot.slane %v295, 4
  %v299 = vrot.slane %v297, 4
  %v300 = vsel %vm71, %v298, %v299
  %v301 = vsel %vm73, %v295, %v300
  %303 = vst [vmem:[#allocation2 + $0x28] sm:$0x33] %v301
  %v304 = vld [vmem:[%s238] sm:$0x3f]
  %v306 = vcombine.low %v304, %v304
  %v308 = vunpack.c.l.s4 1983009808
  %v309 = vunpack.c.0.s8 %v308
  %v310 = vlaneseq
  %v311 = vshrl.u32 %v310, 7
  %v312 = vsub.s32 %v309, %v311
  %v313 = vrot.slane %v306, %v312
  %v315 = vunpack.c.l.s4 1983009808
  %v316 = vunpack.c.0.s8 %v315
  %v317 = vlaneseq
  %v318 = vshrl.u32 %v317, 7
  %v319 = vsub.s32 %v316, %v318
  %v320 = vrot.slane %v304, %v319
  %321 = vrot.lane.b32.xlu0 %v313, 112
  %v322 = vpop.permute.xlu0 %321
  %323 = vrot.lane.b32.xlu0 %v320, 112
  %v324 = vpop.permute.xlu0 %323
  %v325 = vrot.slane %v322, 4
  %v326 = vrot.slane %v324, 4
  %v327 = vsel %vm71, %v325, %v326
  %v328 = vsel %vm73, %v322, %v327
  %330 = vst [vmem:[#allocation2 + $0x28] sm:$0xcc] %v328
  %v331 = vld [vmem:[%s213] sm:$0x3f]
  %v333 = vcombine.high %v331, %v331
  %v335 = vunpack.c.l.s4 1983009808
  %v336 = vunpack.c.0.s8 %v335
  %v337 = vlaneseq
  %v338 = vshrl.u32 %v337, 7
  %v339 = vsub.s32 %v336, %v338
  %v340 = vrot.slane %v331, %v339
  %v342 = vunpack.c.l.s4 1983009808
  %v343 = vunpack.c.0.s8 %v342
  %v344 = vlaneseq
  %v345 = vshrl.u32 %v344, 7
  %v346 = vsub.s32 %v343, %v345
  %v347 = vrot.slane %v333, %v346
  %348 = vrot.lane.b32.xlu0 %v340, 96
  %v349 = vpop.permute.xlu0 %348
  %350 = vrot.lane.b32.xlu0 %v347, 96
  %v351 = vpop.permute.xlu0 %350
  %v352 = vrot.slane %v349, 4
  %v353 = vrot.slane %v351, 4
  %v354 = vsel %vm71, %v352, %v353
  %v355 = vsel %vm155, %v349, %v354
  %357 = vst [vmem:[#allocation2 + $0x38] sm:$0x33] %v355
  %v358 = vld [vmem:[%s225] sm:$0x3f]
  %v360 = vcombine.low %v358, %v358
  %v362 = vunpack.c.l.s4 1983009808
  %v363 = vunpack.c.0.s8 %v362
  %v364 = vlaneseq
  %v365 = vshrl.u32 %v364, 7
  %v366 = vsub.s32 %v363, %v365
  %v367 = vrot.slane %v360, %v366
  %v369 = vunpack.c.l.s4 1983009808
  %v370 = vunpack.c.0.s8 %v369
  %v371 = vlaneseq
  %v372 = vshrl.u32 %v371, 7
  %v373 = vsub.s32 %v370, %v372
  %v374 = vrot.slane %v358, %v373
  %375 = vrot.lane.b32.xlu0 %v367, 96
  %v376 = vpop.permute.xlu0 %375
  %377 = vrot.lane.b32.xlu0 %v374, 96
  %v378 = vpop.permute.xlu0 %377
  %v379 = vrot.slane %v376, 4
  %v380 = vrot.slane %v378, 4
  %v381 = vsel %vm71, %v379, %v380
  %v382 = vsel %vm155, %v376, %v381
  %384 = vst [vmem:[#allocation2 + $0x38] sm:$0xcc] %v382
  %v385 = vld [vmem:[%s238] sm:$0x3f]
  %v387 = vcombine.high %v385, %v385
  %v389 = vunpack.c.l.s4 1983009808
  %v390 = vunpack.c.0.s8 %v389
  %v391 = vlaneseq
  %v392 = vshrl.u32 %v391, 7
  %v393 = vsub.s32 %v390, %v392
  %v394 = vrot.slane %v385, %v393
  %v396 = vunpack.c.l.s4 1983009808
  %v397 = vunpack.c.0.s8 %v396
  %v398 = vlaneseq
  %v399 = vshrl.u32 %v398, 7
  %v400 = vsub.s32 %v397, %v399
  %v401 = vrot.slane %v387, %v400
  %402 = vrot.lane.b32.xlu0 %v394, 96
  %v403 = vpop.permute.xlu0 %402
  %404 = vrot.lane.b32.xlu0 %v401, 96
  %v405 = vpop.permute.xlu0 %404
  %v406 = vrot.slane %v403, 4
  %v407 = vrot.slane %v405, 4
  %v408 = vsel %vm71, %v406, %v407
  %v409 = vsel %vm155, %v403, %v408
  %411 = vst [vmem:[#allocation2 + $0x48] sm:$0x33] %v409
  %v412 = vld [vmem:[%s0] sm:$0xf]
  %v413 = vld [vmem:[%s0 + $0x4] sm:$0xf]
  %v414 = vld [vmem:[#allocation2] sm:$0xff]
  %v415 = vld [vmem:[#allocation2 + $0x8] sm:$0xff]
  %v416 = vld [vmem:[#allocation2 + $0x10] sm:$0xff]
  %v417 = vld [vmem:[#allocation2 + $0x18] sm:$0xff]
  %v418 = vld [vmem:[#allocation2 + $0x20] sm:$0xff]
  %v419 = vld [vmem:[#allocation2 + $0x28] sm:$0xff]
  %v420 = vld [vmem:[#allocation2 + $0x30] sm:$0xff]
  %v421 = vld [vmem:[#allocation2 + $0x38] sm:$0xff]
  %v422 = vld [vmem:[#allocation2 + $0x40] sm:$0x33]
  %v423 = vld [vmem:[#allocation2 + $0x48] sm:$0x33]
  %v426 = vunpack.c.l.b16 %v412
  %v427 = vunpack.c.l.b16 %v413
  %v428 = vpack.c.b16 %v427, %v426
  %v439 = vunpack.c.l.b16 %v414
  %v440 = vunpack.c.h.b16 %v414
  %v441 = vunpack.c.l.b16 %v415
  %v442 = vunpack.c.h.b16 %v415
  %v443 = vunpack.c.l.b16 %v416
  %v444 = vunpack.c.h.b16 %v416
  %v445 = vunpack.c.l.b16 %v417
  %v446 = vunpack.c.h.b16 %v417
  %v447 = vunpack.c.l.b16 %v418
  %v448 = vunpack.c.h.b16 %v418
  %v449 = vunpack.c.l.b16 %v419
  %v450 = vunpack.c.h.b16 %v419
  %v451 = vunpack.c.l.b16 %v420
  %v452 = vunpack.c.h.b16 %v420
  %v453 = vunpack.c.l.b16 %v421
  %v454 = vunpack.c.h.b16 %v421
  %v455 = vunpack.c.l.b16 %v422
  %v456 = vunpack.c.h.b16 %v422
  %v457 = vunpack.c.l.b16 %v423
  %v458 = vunpack.c.h.b16 %v423
  %v459 = vpack.c.b16 %v443, %v439
  %v460 = vpack.c.b16 %v444, %v440
  %v461 = vpack.c.b16 %v445, %v441
  %v462 = vpack.c.b16 %v446, %v442
  %v463 = vpack.c.b16 %v451, %v447
  %v464 = vpack.c.b16 %v452, %v448
  %v465 = vpack.c.b16 %v453, %v449
  %v466 = vpack.c.b16 %v454, %v450
  %v467 = vpack.c.b16 %v455, %v455
  %v468 = vpack.c.b16 %v456, %v456
  %v469 = vpack.c.b16 %v457, %v457
  %v470 = vpack.c.b16 %v458, %v458
  %vm479 = vcmask 293888
  %v481 = vsel %vm479, %v428, 0
  %vm483 = vcmask 1041408
  %v485 = vsel %vm483, %v467, 0
  %v488 = vsel %vm483, %v468, 0
  %v491 = vsel %vm483, %v469, 0
  %v494 = vsel %vm483, %v470, 0
  %496 = vmatprep.subr.bf16.mxu0 %v460
  %497 = vmatpush1.bf16.msra.mxu0 %v459
  %498 = vmatprep.subr.bf16.mxu0 %v464
  %499 = vmatpush1.bf16.msra.mxu0 %v463
  %500 = vmatprep.subr.bf16.mxu0 %v488
  %501 = vmatpush1.bf16.msra.mxu0 %v485
  %502 = vmatprep.subr.bf16.mxu0 0
  %503 = vmatpush1.bf16.msra.mxu0 0
  %504 = vmatprep.subr.bf16.mxu0 0
  %505 = vmatpush1.bf16.msra.mxu0 0
  %506 = vmatprep.subr.bf16.mxu0 0
  %507 = vmatpush1.bf16.msra.mxu0 0
  %508 = vmatprep.subr.bf16.mxu0 0
  %509 = vmatpush1.bf16.msra.mxu0 0
  %510 = vmatprep.subr.bf16.mxu0 0
  %511 = vmatpush1.bf16.msra.mxu0 0
  %512 = vmatprep.subr.bf16.mxu0 0
  %513 = vmatpush1.bf16.msra.mxu0 0
  %514 = vmatprep.subr.bf16.mxu0 0
  %515 = vmatpush1.bf16.msra.mxu0 0
  %516 = vmatprep.subr.bf16.mxu0 0
  %517 = vmatpush1.bf16.msra.mxu0 0
  %518 = vmatprep.subr.bf16.mxu0 0
  %519 = vmatpush1.bf16.msra.mxu0 0
  %520 = vmatprep.subr.bf16.mxu0 0
  %521 = vmatpush1.bf16.msra.mxu0 0
  %522 = vmatprep.subr.bf16.mxu0 0
  %523 = vmatpush1.bf16.msra.mxu0 0
  %524 = vmatprep.subr.bf16.mxu0 0
  %525 = vmatpush1.bf16.msra.mxu0 0
  %526 = vmatprep.subr.bf16.mxu0 0
  %527 = vmatpush1.bf16.msra.mxu0 0
  %528 = vmatprep.mubr.bf16.mxu0 0
  %529 = vmatmul.mubr.bf16.gmra.mrb[0].mxu0 %v481
  %v530 = vpop.f32.mrb[0].mxu0
  %v531 = vadd.f32 0.0, %v530
  %v532 = vpop.f32.mrb[0].mxu0
  %v533 = vadd.f32 0.0, %v532
  %v534 = vpop.f32.mrb[0].mxu0
  %v535 = vadd.f32 0.0, %v534
  %v536 = vpop.f32.mrb[0].mxu0
  %v537 = vadd.f32 0.0, %v536
  %538 = vdwg.mxu0
  %539 = vmatprep.subr.bf16.mxu0 %v462
  %540 = vmatpush1.bf16.msra.mxu0 %v461
  %541 = vmatprep.subr.bf16.mxu0 %v466
  %542 = vmatpush1.bf16.msra.mxu0 %v465
  %543 = vmatprep.subr.bf16.mxu0 %v494
  %544 = vmatpush1.bf16.msra.mxu0 %v491
  %545 = vmatprep.subr.bf16.mxu0 0
  %546 = vmatpush1.bf16.msra.mxu0 0
  %547 = vmatprep.subr.bf16.mxu0 0
  %548 = vmatpush1.bf16.msra.mxu0 0
  %549 = vmatprep.subr.bf16.mxu0 0
  %550 = vmatpush1.bf16.msra.mxu0 0
  %551 = vmatprep.subr.bf16.mxu0 0
  %552 = vmatpush1.bf16.msra.mxu0 0
  %553 = vmatprep.subr.bf16.mxu0 0
  %554 = vmatpush1.bf16.msra.mxu0 0
  %555 = vmatprep.subr.bf16.mxu0 0
  %556 = vmatpush1.bf16.msra.mxu0 0
  %557 = vmatprep.subr.bf16.mxu0 0
  %558 = vmatpush1.bf16.msra.mxu0 0
  %559 = vmatprep.subr.bf16.mxu0 0
  %560 = vmatpush1.bf16.msra.mxu0 0
  %561 = vmatprep.subr.bf16.mxu0 0
  %562 = vmatpush1.bf16.msra.mxu0 0
  %563 = vmatprep.subr.bf16.mxu0 0
  %564 = vmatpush1.bf16.msra.mxu0 0
  %565 = vmatprep.subr.bf16.mxu0 0
  %566 = vmatpush1.bf16.msra.mxu0 0
  %567 = vmatprep.subr.bf16.mxu0 0
  %568 = vmatpush1.bf16.msra.mxu0 0
  %569 = vmatprep.subr.bf16.mxu0 0
  %570 = vmatpush1.bf16.msra.mxu0 0
  %571 = vmatprep.mubr.bf16.mxu0 0
  %572 = vmatmul.mubr.bf16.gmra.mrb[0].mxu0 %v481
  %v573 = vpop.f32.mrb[0].mxu0
  %v574 = vadd.f32 0.0, %v573
  %v575 = vpop.f32.mrb[0].mxu0
  %v576 = vadd.f32 0.0, %v575
  %v577 = vpop.f32.mrb[0].mxu0
  %v578 = vadd.f32 0.0, %v577
  %v579 = vpop.f32.mrb[0].mxu0
  %v580 = vadd.f32 0.0, %v579
  %581 = vdwg.mxu0
  %v582 = vmul.f32 %v531, 0.01
  %v583 = vmul.f32 %v533, 0.01
  %v584 = vmul.f32 %v574, 0.01
  %v585 = vmul.f32 %v576, 0.01
  %v586 = vmul.f32 %v535, 0.01
  %v587 = vmul.f32 %v537, 0.01
  %v588 = vmul.f32 %v578, 0.01
  %v589 = vmul.f32 %v580, 0.01
  %v590 = vmax.f32 %v531, %v582
  %v591 = vmax.f32 %v533, %v583
  %v592 = vmax.f32 %v574, %v584
  %v593 = vmax.f32 %v576, %v585
  %v594 = vmax.f32 %v535, %v586
  %v595 = vmax.f32 %v537, %v587
  %v596 = vmax.f32 %v578, %v588
  %v597 = vmax.f32 %v580, %v589
  %598 = vst [vmem:[%s2] sm:$0xff] %v590
  %599 = vst [vmem:[%s2 + $0x8] sm:$0xff] %v591
  %600 = vst [vmem:[%s2 + $0x10] sm:$0xff] %v594
  %601 = vst [vmem:[%s2 + $0x18] sm:$0xff] %v595
  %s602 = scalar_lea.vmem %s2, 32
  %603 = vst [vmem:[%s602] sm:$0xff] %v592
  %604 = vst [vmem:[%s602 + $0x8] sm:$0xff] %v593
  %605 = vst [vmem:[%s602 + $0x10] sm:$0xff] %v596
  %606 = vst [vmem:[%s602 + $0x18] sm:$0xff] %v597
  // Predicated region
  $region10: #{rui_lifting_conv_cn.1} parent=0 // pred_check
    _
  $region11: #{rui_lifting_conv_cn.1} parent=0 // pred_check_branch
    %608 = sbr.rel (0) target = $region13
  $region12: #{rui_lifting_conv_cn.1} parent=0 // pred_region
    _
  $region13: #{rui_lifting_conv_cn.1} parent=0 // pred_fallthru
    _
  // Predicated region
  $region14: #{rui_lifting_conv_cn.1} parent=0 // pred_check
    _
  $region15: #{rui_lifting_conv_cn.1} parent=0 // pred_check_branch
    %610 = sbr.rel (0) target = $region17
  $region16: #{rui_lifting_conv_cn.1} parent=0 // pred_region
    _
  $region17: #{rui_lifting_conv_cn.1} parent=0 // pred_fallthru
    _

</llo_original>
